<compile_context>
chip_gen: v6e
topology: v6e:2x2x1
jax: 0.10.0
libtpu: 0.0.40
codegen_flags: <defaults>
</compile_context>

<pallas_src>
import functools

import jax
import jax.numpy as jnp
from jax.experimental import pallas as pl
from jax.experimental.pallas import tpu as pltpu

MARGIN = 2.0
EPS = 1e-6  # torch.pairwise_distance default eps

# Per-block VMEM budget for the two double-buffered feature inputs (o1, o2).
# 16 MiB of input blocks (2 inputs x 2 pipeline buffers) stays well inside
# v7x's 64 MiB physical VMEM while being big enough to approach the HBM
# roofline on v5e/v6e (this kernel is purely memory-bandwidth bound).
_INPUT_BLOCK_BUDGET_BYTES = 16 << 20
_MAX_TILE_ROWS = 2048  # diminishing returns beyond ~1-2k rows per step


def _round_up(x, m):
    return ((x + m - 1) // m) * m


def _choose_tile_rows(n, d):
    # 2 inputs * 2 buffers * tn * d * 4B  <=  budget
    per_row_bytes = 2 * 2 * max(d, 1) * 4
    tn = _INPUT_BLOCK_BUDGET_BYTES // per_row_bytes
    tn = min(tn, _MAX_TILE_ROWS, _round_up(n, 8))
    tn = max(8, (tn // 8) * 8)  # sublane-aligned row tiles
    return tn


def _loss_kernel(o1_ref, o2_ref, y_ref, out_ref, *, valid_n, masked):
    i = pl.program_id(0)

    o1 = o1_ref[...].astype(jnp.float32)
    o2 = o2_ref[...].astype(jnp.float32)
    y = y_ref[...].astype(jnp.float32)

    diff = o1 - o2 + EPS
    dist2 = jnp.sum(diff * diff, axis=-1, keepdims=True)  # (tn, 1)
    dist = jnp.sqrt(dist2)

    # Positive term uses the squared distance directly (no sqrt->square trip);
    # only the margin term needs the sqrt.
    per_row = (1.0 - y) * dist2 + y * jnp.square(jnp.maximum(MARGIN - dist, 0.0))

    if masked:
        # Zero out padded rows (padding rows would otherwise contribute
        # (eps*sqrt(D))^2 to the sum).
        tn = per_row.shape[0]
        row_ids = jax.lax.broadcasted_iota(jnp.int32, (tn, 1), 0) + i * tn
        per_row = jnp.where(row_ids < valid_n, per_row, 0.0)

    # One partial sum per grid block; the tiny final reduction + divide happen
    # in the wrapper. Per-block (not carried) outputs keep the grid axis
    # "parallel" so both v7x TensorCores can stream half the rows each.
    out_ref[...] = jnp.sum(per_row).reshape(1, 1, 1)


def contrastive_loss(o1, o2, y):
    """o1, o2: [N, D] (f32 or bf16); y: [N, 1]. Returns scalar float32 loss."""
    N, D = o1.shape
    assert o2.shape == (N, D) and y.shape == (N, 1)

    tn = _choose_tile_rows(N, D)
    n_pad = _round_up(N, tn)
    pad = n_pad - N
    if pad:
        o1 = jnp.pad(o1, ((0, pad), (0, 0)))
        o2 = jnp.pad(o2, ((0, pad), (0, 0)))
        y = jnp.pad(y, ((0, pad), (0, 0)))
    grid = n_pad // tn

    kernel = functools.partial(_loss_kernel, valid_n=N, masked=(pad != 0))

    partials = pl.pallas_call(
        kernel,
        out_shape=jax.ShapeDtypeStruct((grid, 1, 1), jnp.float32),
        grid_spec=pltpu.PrefetchScalarGridSpec(
            num_scalar_prefetch=0,
            grid=(grid,),
            in_specs=[
                pl.BlockSpec((tn, D), lambda i: (i, 0)),
                pl.BlockSpec((tn, D), lambda i: (i, 0)),
                pl.BlockSpec((tn, 1), lambda i: (i, 0)),
            ],
            # 3-D output: last two block dims equal the full array dims, so the
            # (8,128) tiling rule is trivially satisfied for the scalar partials.
            out_specs=pl.BlockSpec((1, 1, 1), lambda i: (i, 0, 0)),
        ),
        compiler_params=pltpu.CompilerParams(
            dimension_semantics=("parallel",),
            # Raise the scoped-VMEM limit above the v5e/v6e defaults (16/32 MiB)
            # but stay below v7x's 64 MiB physical VMEM.
            vmem_limit_bytes=48 << 20,
        ),
    )(o1, o2, y)

    return jnp.sum(partials) / jnp.float32(N)


def _reference_loss(o1, o2, y):
    o1 = o1.astype(jnp.float32)
    o2 = o2.astype(jnp.float32)
    y = y.astype(jnp.float32)
    diff = o1 - o2 + EPS
    dist = jnp.sqrt(jnp.sum(diff * diff, axis=-1, keepdims=True))
    return jnp.mean((1.0 - y) * dist**2 + y * jnp.maximum(MARGIN - dist, 0.0) ** 2)


if __name__ == "__main__":
    key = jax.random.PRNGKey(0)

    # Case 1: small shapes, tile == N, no padding.
    k1, k2, k3, k4 = jax.random.split(key, 4)
    N, D = 16, 32
    o1 = jax.random.normal(k1, (N, D), dtype=jnp.float32)
    o2 = jax.random.normal(k2, (N, D), dtype=jnp.float32)
    y = jax.random.bernoulli(k3, 0.5, (N, 1)).astype(jnp.float32)
    loss = jax.block_until_ready(contrastive_loss(o1, o2, y))
    ref = jax.block_until_ready(_reference_loss(o1, o2, y))
    assert jnp.allclose(loss, ref, rtol=1e-5, atol=1e-6), (loss, ref)

    # Case 2: N not a multiple of the tile -> exercises padding + in-kernel mask.
    k5, k6, k7 = jax.random.split(k4, 3)
    N2, D2 = 20, 32
    o1b = jax.random.normal(k5, (N2, D2), dtype=jnp.float32)
    o2b = jax.random.normal(k6, (N2, D2), dtype=jnp.float32)
    yb = jax.random.bernoulli(k7, 0.5, (N2, 1)).astype(jnp.float32)
    loss2 = jax.block_until_ready(contrastive_loss(o1b, o2b, yb))
    ref2 = jax.block_until_ready(_reference_loss(o1b, o2b, yb))
    assert jnp.allclose(loss2, ref2, rtol=1e-5, atol=1e-6), (loss2, ref2)

    # Case 3: bf16 inputs (halves HBM traffic; kernel accumulates in f32).
    loss3 = jax.block_until_ready(
        contrastive_loss(o1.astype(jnp.bfloat16), o2.astype(jnp.bfloat16), y)
    )
    ref3 = jax.block_until_ready(
        _reference_loss(o1.astype(jnp.bfloat16), o2.astype(jnp.bfloat16), y)
    )
    assert jnp.allclose(loss3, ref3, rtol=1e-5, atol=1e-6), (loss3, ref3)

    print("KERNEL_OK")
</pallas_src>

<mosaic_0001>
module attributes {stable_mosaic.version = 11 : i64} {
  func.func @_loss_kernel(%arg0: i32, %arg1: memref<16x32xf32, #tpu.memory_space<vmem>>, %arg2: memref<16x32xf32, #tpu.memory_space<vmem>>, %arg3: memref<16x1xf32, #tpu.memory_space<vmem>>, %arg4: memref<1x1x1xf32, #tpu.memory_space<vmem>>) attributes {dimension_semantics = [#tpu.dimension_semantics<parallel>], iteration_bounds = array<i64: 1>, scalar_prefetch = 0 : i64, scratch_operands = 0 : i64, tpu.core_type = #tpu.core_type<tc>, window_params = [{transform_indices = @transform_0, window_bounds = array<i64: 16, 32>}, {transform_indices = @transform_1, window_bounds = array<i64: 16, 32>}, {transform_indices = @transform_2, window_bounds = array<i64: 16, 1>}, {transform_indices = @transform_3, window_bounds = array<i64: 1, 1, 1>}]} {
    %c0 = arith.constant 0 : index
    %c0_0 = arith.constant 0 : index
    %0 = vector.load %arg1[%c0, %c0_0] : memref<16x32xf32, #tpu.memory_space<vmem>>, vector<16x32xf32>
    %c0_1 = arith.constant 0 : index
    %c0_2 = arith.constant 0 : index
    %1 = vector.load %arg2[%c0_1, %c0_2] : memref<16x32xf32, #tpu.memory_space<vmem>>, vector<16x32xf32>
    %c0_3 = arith.constant 0 : index
    %c0_4 = arith.constant 0 : index
    %2 = vector.load %arg3[%c0_3, %c0_4] : memref<16x1xf32, #tpu.memory_space<vmem>>, vector<16x1xf32>
    %3 = arith.subf %0, %1 : vector<16x32xf32>
    %cst = arith.constant 9.99999997E-7 : f32
    %4 = vector.broadcast %cst : f32 to vector<16x32xf32>
    %5 = arith.addf %3, %4 : vector<16x32xf32>
    %6 = arith.mulf %5, %5 : vector<16x32xf32>
    %cst_5 = arith.constant dense<0.000000e+00> : vector<16xf32>
    %7 = vector.multi_reduction <add>, %6, %cst_5 [1] : vector<16x32xf32> to vector<16xf32>
    %8 = vector.shape_cast %7 : vector<16xf32> to vector<16x1xf32>
    %9 = math.sqrt %8 : vector<16x1xf32>
    %cst_6 = arith.constant 1.000000e+00 : f32
    %10 = vector.broadcast %cst_6 : f32 to vector<16x1xf32>
    %11 = arith.subf %10, %2 : vector<16x1xf32>
    %12 = arith.mulf %11, %8 : vector<16x1xf32>
    %cst_7 = arith.constant 2.000000e+00 : f32
    %13 = vector.broadcast %cst_7 : f32 to vector<16x1xf32>
    %14 = arith.subf %13, %9 : vector<16x1xf32>
    %cst_8 = arith.constant 0.000000e+00 : f32
    %15 = vector.broadcast %cst_8 : f32 to vector<16x1xf32>
    %16 = arith.maximumf %14, %15 : vector<16x1xf32>
    %17 = arith.mulf %16, %16 : vector<16x1xf32>
    %18 = arith.mulf %2, %17 : vector<16x1xf32>
    %19 = arith.addf %12, %18 : vector<16x1xf32>
    %20 = vector.shape_cast %19 : vector<16x1xf32> to vector<1x16x1xf32>
    %cst_9 = arith.constant dense<0.000000e+00> : vector<1xf32>
    %21 = vector.multi_reduction <add>, %20, %cst_9 [1, 2] : vector<1x16x1xf32> to vector<1xf32>
    %22 = vector.shape_cast %21 : vector<1xf32> to vector<1x1x1xf32>
    %23 = vector.extract %22[0, 0, 0] : f32 from vector<1x1x1xf32>
    %24 = vector.broadcast %23 : f32 to vector<1x1x1xf32>
    %c0_10 = arith.constant 0 : index
    %c0_11 = arith.constant 0 : index
    %c0_12 = arith.constant 0 : index
    %25 = vector.load %arg4[%c0_10, %c0_11, %c0_12] : memref<1x1x1xf32, #tpu.memory_space<vmem>>, vector<1x1x1xf32>
    tpu.vector_store %arg4[%c0_10, %c0_11, %c0_12], %24 {strides = array<i32>} : memref<1x1x1xf32, #tpu.memory_space<vmem>>, vector<1x1x1xf32>,
    return
  }
  func.func @transform_0(%arg0: i32) -> (i32, i32) {
    %c0_i32 = arith.constant 0 : i32
    %c0_i32_0 = arith.constant 0 : i32
    return %arg0, %c0_i32 : i32, i32
  }
  func.func @transform_1(%arg0: i32) -> (i32, i32) {
    %c0_i32 = arith.constant 0 : i32
    %c0_i32_0 = arith.constant 0 : i32
    return %arg0, %c0_i32 : i32, i32
  }
  func.func @transform_2(%arg0: i32) -> (i32, i32) {
    %c0_i32 = arith.constant 0 : i32
    %c0_i32_0 = arith.constant 0 : i32
    return %arg0, %c0_i32 : i32, i32
  }
  func.func @transform_3(%arg0: i32) -> (i32, i32, i32) {
    %c0_i32 = arith.constant 0 : i32
    %c0_i32_0 = arith.constant 0 : i32
    %c0_i32_1 = arith.constant 0 : i32
    return %arg0, %c0_i32, %c0_i32_0 : i32, i32, i32
  }
}

</mosaic_0001>

<llo_original>
// kernel: tpu_custom_call.1
$region0: #{tpu_custom_call.1}
  #allocation0 [shape = 'u32[]', space=smem, size = 0x4, offset = 0x4, fixed_abs, tag = 'smem constant byte address 0x4 - core index']
  #allocation1 [shape = 'u32[144,128]{1,0:T(1,128)}', space=vmem, size = 0x12000, scoped, tag = 'internal scratch']
  %s0 = inlined_call_operand.vmem [shape: f32[16,32], index: 0, kind: input, shape index: {}]
  %s1 = inlined_call_operand.hbm [shape: f32[16,32], index: 1, kind: input, shape index: {}]
  %s2 = inlined_call_operand.vmem [shape: f32[16,1], index: 2, kind: input, shape index: {}]
  %s3 = inlined_call_operand.hbm [shape: f32[1,1,1], index: 3, kind: output, shape index: {}]
  %s4 = sld [smem:[#allocation0]]
  $region26: #{tpu_custom_call.1} parent=0
    _
  %s6 = ssub.s32 1, %s4
  %s7 = scalar_select 0, %s6, %s4
  $region1: #{tpu_custom_call.1} parent=0
    #allocation2 [shape = 'u8[8192]{0}', space=vmem, size = 0x2000, scoped, tag = 'input window, operand 1, single buffered']
    #allocation3 [shape = 's32[1]{0}', space=sflag, size = 0x4, scoped, tag = 'scoped memory for tpu_custom_call.1']
    #allocation4 [shape = 's32[1]{0}', space=sflag, size = 0x4, scoped, tag = 'scoped memory for tpu_custom_call.1']
    #allocation5 [shape = 'u8[512]{0}', space=vmem, size = 0x400, scoped, tag = 'output window, operand 0, single buffered']
    %8 = vsyncpa [#allocation3], 0
    %9 = vsyncpa [#allocation4], 0
    // Predicated region
    $region2: #{tpu_custom_call.1} parent=1 // pred_check
      _
    $region3: #{tpu_custom_call.1} parent=1 // pred_check_branch
      %11 = sbr.rel (0) target = $region5
    $region4: #{tpu_custom_call.1} parent=1 // pred_region
      _
    $region5: #{tpu_custom_call.1} parent=1 // pred_fallthru
      _
    // Predicated region
    $region6: #{tpu_custom_call.1} parent=1 // pred_check
      _
    $region7: #{tpu_custom_call.1} parent=1 // pred_check_branch
      %13 = sbr.rel (0) target = $region9
    $region8: #{tpu_custom_call.1} parent=1 // pred_region
      %s15 = ssub.s32 256, 256
      %16 = vsyncadd [#allocation3], %s15
      %s17 = sshll.u32 [#allocation2], 4
      %s18 = int_to_ptr.vmem [resolvable:$true] %s17
      %23 = dma.hbm_to_vmem [thread:$0]  %s1, 256, %s18, [#allocation3], 128, 128, 8
    $region9: #{tpu_custom_call.1} parent=1 // pred_fallthru
      _
    // Predicated region
    $region10: #{tpu_custom_call.1} parent=1 // pred_check
      _
    $region11: #{tpu_custom_call.1} parent=1 // pred_check_branch
      %25 = sbr.rel (0) target = $region13
    $region12: #{tpu_custom_call.1} parent=1 // pred_region
      _
    $region13: #{tpu_custom_call.1} parent=1 // pred_fallthru
      _
    // Predicated region
    $region14: #{tpu_custom_call.1} parent=1 // pred_check
      _
    $region15: #{tpu_custom_call.1} parent=1 // pred_check_branch
      %27 = sbr.rel (0) target = $region17
    $region16: #{tpu_custom_call.1} parent=1 // pred_region
      %28 = dma.done [#allocation3], 256
    $region17: #{tpu_custom_call.1} parent=1 // pred_fallthru
      _
    %v29 = vld [vmem:[%s0] sm:$0xff]
    %v30 = vld [vmem:[%s0 + $0x8] sm:$0xff]
    %v31 = vld [vmem:[#allocation2] sm:$0xff]
    %v32 = vld [vmem:[#allocation2 + $0x8] sm:$0xff]
    %v33 = vld [vmem:[%s2] sm:$0xff]
    %v34 = vld [vmem:[%s2 + $0x8] sm:$0xff]
    %v35 = vsub.f32 %v29, %v31
    %v36 = vsub.f32 %v30, %v32
    %v37 = vadd.f32 %v35, 1e-06
    %v38 = vadd.f32 %v36, 1e-06
    %v39 = vmul.f32 %v37, %v37
    %v40 = vmul.f32 %v38, %v38
    %vm41 = vcmask 261120
    %v42 = vsel %vm41, %v39, 0.0
    %43 = vadd.xlane.f32.xlu0 %v42
    %v44 = vpop.xlane.xlu0 %43
    %v45 = vsel %vm41, %v40, 0.0
    %46 = vadd.xlane.f32.xlu0 %v45
    %v47 = vpop.xlane.xlu0 %46
    %v48 = vrsqrt.pop %v44
    %v49 = vmul.f32 %v44, %v48
    %vm50 = vcmp.eq.f32.partialorder %v44, inf
    %v51 = vsel %vm50, %v44, %v49
    %vm52 = vcmp.eq.f32.partialorder %v44, 0.0
    %v53 = vand.u32 %v44, 2147483648
    %v54 = vsel %vm52, %v53, %v51
    %v55 = vrsqrt.pop %v47
    %v56 = vmul.f32 %v47, %v55
    %vm57 = vcmp.eq.f32.partialorder %v47, inf
    %v58 = vsel %vm57, %v47, %v56
    %vm59 = vcmp.eq.f32.partialorder %v47, 0.0
    %v60 = vand.u32 %v47, 2147483648
    %v61 = vsel %vm59, %v60, %v58
    %v62 = vsub.f32 1.0, %v33
    %v63 = vsub.f32 1.0, %v34
    %v64 = vmul.f32 %v62, %v44
    %v65 = vmul.f32 %v63, %v47
    %v66 = vsub.f32 2.0, %v54
    %v67 = vsub.f32 2.0, %v61
    %v68 = vmax.f32 %v66, 0.0
    %v69 = vmax.f32 %v67, 0.0
    %v70 = vmul.f32 %v68, %v68
    %v71 = vmul.f32 %v69, %v69
    %v72 = vmul.f32 %v33, %v70
    %v73 = vmul.f32 %v34, %v71
    %v74 = vadd.f32 %v64, %v72
    %v75 = vadd.f32 %v65, %v73
    %vm76 = vcmask 7168
    %v77 = vsel %vm76, %v74, 0.0
    %v78 = vsel %vm76, %v75, 0.0
    %v79 = vadd.f32 %v77, %v78
    %80 = vadd.xlane.f32.xlu0 %v79
    %v81 = vpop.xlane.xlu0 %80
    %v82 = vrot.slane %v81, 4
    %v83 = vadd.f32 %v81, %v82
    %v84 = vrot.slane %v83, 2
    %v85 = vadd.f32 %v83, %v84
    %v86 = vrot.slane %v85, 1
    %v87 = vadd.f32 %v85, %v86
    %s88 = vtos %v87
    %v89 = vstv %s88
    %vm90 = vcmask 0
    %91 = vst.msk [vmem:[#allocation5] sm:$0x1] %vm90, %v89
    // Predicated region
    $region18: #{tpu_custom_call.1} parent=1 // pred_check
      _
    $region19: #{tpu_custom_call.1} parent=1 // pred_check_branch
      %93 = sbr.rel (0) target = $region21
    $region20: #{tpu_custom_call.1} parent=1 // pred_region
      %s95 = ssub.s32 16, 16
      %96 = vsyncadd [#allocation4], %s95
      %s98 = sshll.u32 [#allocation5], 4
      %s99 = int_to_ptr.vmem [resolvable:$true] %s98
      %101 = dma.vmem_to_hbm [thread:$0]  %s99, 16, %s3, [#allocation4]
    $region21: #{tpu_custom_call.1} parent=1 // pred_fallthru
      _
    // Predicated region
    $region22: #{tpu_custom_call.1} parent=1 // pred_check
      _
    $region23: #{tpu_custom_call.1} parent=1 // pred_check_branch
      %103 = sbr.rel (0) target = $region25
    $region24: #{tpu_custom_call.1} parent=1 // pred_region
      %104 = dma.done [#allocation4], 16
    $region25: #{tpu_custom_call.1} parent=1 // pred_fallthru
      _
    %105 = vsyncpa [#allocation3], 1
    %106 = vsyncpa [#allocation4], 1

</llo_original>
